<compile_context>
chip_gen: v7x
topology: tpu7x:2x2x1
jax: 0.10.0
libtpu: 0.0.40
codegen_flags: <defaults>
</compile_context>

<pallas_src>
import functools

import jax
import jax.numpy as jnp
from jax.experimental import pallas as pl
from jax.experimental.pallas import tpu as pltpu

# Problem constants (torch.nn.Conv2d(4, 8, 3, stride=1, padding=1, dilation=2, groups=4))
CIN = 4
COUT = 8
K = 3
DIL = 2
PAD = 1
GROUPS = 4
OC_PER_GROUP = COUT // GROUPS  # 2


def _conv_where_kernel(x_ref, w_ref, b_ref, o_ref, *, wp, lpad):
    # x_ref : (N, COUT, LPAD) f32 VMEM  -- per-output-channel padded input, flat Hp*Wp,
    #                                      zero-padded to LPAD (multiple of 128 lanes)
    # w_ref : (K*K, COUT, 1)  f32 VMEM  -- per-tap, per-output-channel weights
    # b_ref : (COUT, 1)       f32 VMEM
    # o_ref : (N, COUT, LPAD) f32 VMEM
    x = x_ref[...]
    acc = jnp.zeros(x.shape, jnp.float32)
    for kh in range(K):
        for kw in range(K):
            s = kh * DIL * wp + kw * DIL            # flat tap offset (static)
            # want xs[p] = x[p + s]; pltpu.roll follows jnp.roll semantics,
            # so use shift = lpad - s (wraparound only lands in the slop
            # region that the wrapper slices away).
            xs = x if s == 0 else pltpu.roll(x, shift=lpad - s, axis=2)
            acc = acc + xs * w_ref[kh * K + kw]     # (COUT,1) lane-broadcast
    acc = acc + b_ref[...]
    # fused epilogue: where(v > 0, -v, 0.1*v) == minimum(-v, 0.1*v)
    o_ref[...] = jnp.minimum(-acc, acc * 0.1)


@jax.jit
def model_forward(x, w, b):
    n, cin, h, wdt = x.shape
    assert cin == CIN
    hp, wp = h + 2 * PAD, wdt + 2 * PAD
    ho = hp - DIL * (K - 1)
    wo = wp - DIL * (K - 1)
    flat = hp * wp
    lpad = pl.cdiv(flat, 128) * 128                 # lane-dense last dim

    # Wrapper-side layout plumbing (all fused by XLA under jit).
    x_pad = jnp.pad(x, ((0, 0), (0, 0), (PAD, PAD), (PAD, PAD)))
    x_rep = jnp.repeat(x_pad, OC_PER_GROUP, axis=1)            # (n, COUT, hp, wp)
    x_flat = x_rep.reshape(n, COUT, flat)
    x_lane = jnp.pad(x_flat, ((0, 0), (0, 0), (0, lpad - flat)))

    w_taps = w.reshape(COUT, K * K).T.reshape(K * K, COUT, 1)  # (9, 8, 1)
    b_vec = b.reshape(COUT, 1)

    kernel = functools.partial(_conv_where_kernel, wp=wp, lpad=lpad)
    out_flat = pl.pallas_call(
        kernel,
        out_shape=jax.ShapeDtypeStruct((n, COUT, lpad), jnp.float32),
        in_specs=[
            pl.BlockSpec(memory_space=pltpu.MemorySpace.VMEM),
            pl.BlockSpec(memory_space=pltpu.MemorySpace.VMEM),
            pl.BlockSpec(memory_space=pltpu.MemorySpace.VMEM),
        ],
        out_specs=pl.BlockSpec(memory_space=pltpu.MemorySpace.VMEM),
    )(x_lane, w_taps, b_vec)

    # Valid-window extraction happens outside the kernel so every in-kernel
    # store stays a full 128-lane unmasked vst.
    out = out_flat[:, :, :flat].reshape(n, COUT, hp, wp)[:, :, :ho, :wo]
    return out


def reference_forward(x, w, b):
    v1 = jax.lax.conv_general_dilated(
        x, w,
        window_strides=(1, 1),
        padding=((PAD, PAD), (PAD, PAD)),
        rhs_dilation=(DIL, DIL),
        dimension_numbers=("NCHW", "OIHW", "NCHW"),
        feature_group_count=GROUPS,
    ) + b.reshape(1, -1, 1, 1)
    return jnp.where(v1 > 0, -v1, v1 * 0.1)


if __name__ == "__main__":
    key = jax.random.PRNGKey(0)
    kx, kw, kb = jax.random.split(key, 3)

    # Small shapes consistent with the module: batch=2, 4 in-channels, 16x16.
    x = jax.random.normal(kx, (2, CIN, 16, 16), dtype=jnp.float32)
    # Conv2d weight shape (8, 1, 3, 3) (groups=4 -> 1 in-channel per group), bias (8,)
    w = jax.random.normal(kw, (COUT, CIN // GROUPS, K, K), dtype=jnp.float32) * 0.2
    b = jax.random.normal(kb, (COUT,), dtype=jnp.float32) * 0.1

    out = model_forward(x, w, b)
    jax.block_until_ready(out)

    expected = reference_forward(x, w, b)
    assert out.shape == expected.shape == (2, COUT, 14, 14)
    assert jnp.allclose(out, expected, atol=1e-5, rtol=1e-5)

    print("KERNEL_OK")
</pallas_src>

<mosaic_0001>
module attributes {stable_mosaic.version = 11 : i64} {
  func.func @_conv_where_kernel(%arg0: memref<2x8x384xf32, #tpu.memory_space<vmem>>, %arg1: memref<9x8x1xf32, #tpu.memory_space<vmem>>, %arg2: memref<8x1xf32, #tpu.memory_space<vmem>>, %arg3: memref<2x8x384xf32, #tpu.memory_space<vmem>>) attributes {dimension_semantics = [], scalar_prefetch = 0 : i64, scratch_operands = 0 : i64, tpu.core_type = #tpu.core_type<tc>} {
    %c0 = arith.constant 0 : index
    %c0_0 = arith.constant 0 : index
    %c0_1 = arith.constant 0 : index
    %0 = vector.load %arg0[%c0, %c0_0, %c0_1] : memref<2x8x384xf32, #tpu.memory_space<vmem>>, vector<2x8x384xf32>
    %cst = arith.constant 0.000000e+00 : f32
    %1 = vector.broadcast %cst : f32 to vector<2x8x384xf32>
    %c0_2 = arith.constant 0 : index
    %c0_3 = arith.constant 0 : index
    %c0_4 = arith.constant 0 : index
    %2 = vector.load %arg1[%c0_2, %c0_3, %c0_4] : memref<9x8x1xf32, #tpu.memory_space<vmem>>, vector<1x8x1xf32>
    %3 = vector.shape_cast %2 : vector<1x8x1xf32> to vector<8x1xf32>
    %4 = vector.shape_cast %3 : vector<8x1xf32> to vector<1x8x1xf32>
    %5 = vector.broadcast %4 : vector<1x8x1xf32> to vector<2x8x384xf32>
    %6 = arith.mulf %0, %5 : vector<2x8x384xf32>
    %7 = arith.addf %1, %6 : vector<2x8x384xf32>
    %c382_i32 = arith.constant 382 : i32
    %8 = tpu.dynamic_rotate %0 by %c382_i32 dim 2 : vector<2x8x384xf32>, i32 -> vector<2x8x384xf32>
    %c1 = arith.constant 1 : index
    %c0_5 = arith.constant 0 : index
    %c0_6 = arith.constant 0 : index
    %9 = vector.load %arg1[%c1, %c0_5, %c0_6] : memref<9x8x1xf32, #tpu.memory_space<vmem>>, vector<1x8x1xf32>
    %10 = vector.shape_cast %9 : vector<1x8x1xf32> to vector<8x1xf32>
    %11 = vector.shape_cast %10 : vector<8x1xf32> to vector<1x8x1xf32>
    %12 = vector.broadcast %11 : vector<1x8x1xf32> to vector<2x8x384xf32>
    %13 = arith.mulf %8, %12 : vector<2x8x384xf32>
    %14 = arith.addf %7, %13 : vector<2x8x384xf32>
    %c380_i32 = arith.constant 380 : i32
    %15 = tpu.dynamic_rotate %0 by %c380_i32 dim 2 : vector<2x8x384xf32>, i32 -> vector<2x8x384xf32>
    %c2 = arith.constant 2 : index
    %c0_7 = arith.constant 0 : index
    %c0_8 = arith.constant 0 : index
    %16 = vector.load %arg1[%c2, %c0_7, %c0_8] : memref<9x8x1xf32, #tpu.memory_space<vmem>>, vector<1x8x1xf32>
    %17 = vector.shape_cast %16 : vector<1x8x1xf32> to vector<8x1xf32>
    %18 = vector.shape_cast %17 : vector<8x1xf32> to vector<1x8x1xf32>
    %19 = vector.broadcast %18 : vector<1x8x1xf32> to vector<2x8x384xf32>
    %20 = arith.mulf %15, %19 : vector<2x8x384xf32>
    %21 = arith.addf %14, %20 : vector<2x8x384xf32>
    %c348_i32 = arith.constant 348 : i32
    %22 = tpu.dynamic_rotate %0 by %c348_i32 dim 2 : vector<2x8x384xf32>, i32 -> vector<2x8x384xf32>
    %c3 = arith.constant 3 : index
    %c0_9 = arith.constant 0 : index
    %c0_10 = arith.constant 0 : index
    %23 = vector.load %arg1[%c3, %c0_9, %c0_10] : memref<9x8x1xf32, #tpu.memory_space<vmem>>, vector<1x8x1xf32>
    %24 = vector.shape_cast %23 : vector<1x8x1xf32> to vector<8x1xf32>
    %25 = vector.shape_cast %24 : vector<8x1xf32> to vector<1x8x1xf32>
    %26 = vector.broadcast %25 : vector<1x8x1xf32> to vector<2x8x384xf32>
    %27 = arith.mulf %22, %26 : vector<2x8x384xf32>
    %28 = arith.addf %21, %27 : vector<2x8x384xf32>
    %c346_i32 = arith.constant 346 : i32
    %29 = tpu.dynamic_rotate %0 by %c346_i32 dim 2 : vector<2x8x384xf32>, i32 -> vector<2x8x384xf32>
    %c4 = arith.constant 4 : index
    %c0_11 = arith.constant 0 : index
    %c0_12 = arith.constant 0 : index
    %30 = vector.load %arg1[%c4, %c0_11, %c0_12] : memref<9x8x1xf32, #tpu.memory_space<vmem>>, vector<1x8x1xf32>
    %31 = vector.shape_cast %30 : vector<1x8x1xf32> to vector<8x1xf32>
    %32 = vector.shape_cast %31 : vector<8x1xf32> to vector<1x8x1xf32>
    %33 = vector.broadcast %32 : vector<1x8x1xf32> to vector<2x8x384xf32>
    %34 = arith.mulf %29, %33 : vector<2x8x384xf32>
    %35 = arith.addf %28, %34 : vector<2x8x384xf32>
    %c344_i32 = arith.constant 344 : i32
    %36 = tpu.dynamic_rotate %0 by %c344_i32 dim 2 : vector<2x8x384xf32>, i32 -> vector<2x8x384xf32>
    %c5 = arith.constant 5 : index
    %c0_13 = arith.constant 0 : index
    %c0_14 = arith.constant 0 : index
    %37 = vector.load %arg1[%c5, %c0_13, %c0_14] : memref<9x8x1xf32, #tpu.memory_space<vmem>>, vector<1x8x1xf32>
    %38 = vector.shape_cast %37 : vector<1x8x1xf32> to vector<8x1xf32>
    %39 = vector.shape_cast %38 : vector<8x1xf32> to vector<1x8x1xf32>
    %40 = vector.broadcast %39 : vector<1x8x1xf32> to vector<2x8x384xf32>
    %41 = arith.mulf %36, %40 : vector<2x8x384xf32>
    %42 = arith.addf %35, %41 : vector<2x8x384xf32>
    %c312_i32 = arith.constant 312 : i32
    %43 = tpu.dynamic_rotate %0 by %c312_i32 dim 2 : vector<2x8x384xf32>, i32 -> vector<2x8x384xf32>
    %c6 = arith.constant 6 : index
    %c0_15 = arith.constant 0 : index
    %c0_16 = arith.constant 0 : index
    %44 = vector.load %arg1[%c6, %c0_15, %c0_16] : memref<9x8x1xf32, #tpu.memory_space<vmem>>, vector<1x8x1xf32>
    %45 = vector.shape_cast %44 : vector<1x8x1xf32> to vector<8x1xf32>
    %46 = vector.shape_cast %45 : vector<8x1xf32> to vector<1x8x1xf32>
    %47 = vector.broadcast %46 : vector<1x8x1xf32> to vector<2x8x384xf32>
    %48 = arith.mulf %43, %47 : vector<2x8x384xf32>
    %49 = arith.addf %42, %48 : vector<2x8x384xf32>
    %c310_i32 = arith.constant 310 : i32
    %50 = tpu.dynamic_rotate %0 by %c310_i32 dim 2 : vector<2x8x384xf32>, i32 -> vector<2x8x384xf32>
    %c7 = arith.constant 7 : index
    %c0_17 = arith.constant 0 : index
    %c0_18 = arith.constant 0 : index
    %51 = vector.load %arg1[%c7, %c0_17, %c0_18] : memref<9x8x1xf32, #tpu.memory_space<vmem>>, vector<1x8x1xf32>
    %52 = vector.shape_cast %51 : vector<1x8x1xf32> to vector<8x1xf32>
    %53 = vector.shape_cast %52 : vector<8x1xf32> to vector<1x8x1xf32>
    %54 = vector.broadcast %53 : vector<1x8x1xf32> to vector<2x8x384xf32>
    %55 = arith.mulf %50, %54 : vector<2x8x384xf32>
    %56 = arith.addf %49, %55 : vector<2x8x384xf32>
    %c308_i32 = arith.constant 308 : i32
    %57 = tpu.dynamic_rotate %0 by %c308_i32 dim 2 : vector<2x8x384xf32>, i32 -> vector<2x8x384xf32>
    %c8 = arith.constant 8 : index
    %c0_19 = arith.constant 0 : index
    %c0_20 = arith.constant 0 : index
    %58 = vector.load %arg1[%c8, %c0_19, %c0_20] : memref<9x8x1xf32, #tpu.memory_space<vmem>>, vector<1x8x1xf32>
    %59 = vector.shape_cast %58 : vector<1x8x1xf32> to vector<8x1xf32>
    %60 = vector.shape_cast %59 : vector<8x1xf32> to vector<1x8x1xf32>
    %61 = vector.broadcast %60 : vector<1x8x1xf32> to vector<2x8x384xf32>
    %62 = arith.mulf %57, %61 : vector<2x8x384xf32>
    %63 = arith.addf %56, %62 : vector<2x8x384xf32>
    %c0_21 = arith.constant 0 : index
    %c0_22 = arith.constant 0 : index
    %64 = vector.load %arg2[%c0_21, %c0_22] : memref<8x1xf32, #tpu.memory_space<vmem>>, vector<8x1xf32>
    %65 = vector.shape_cast %64 : vector<8x1xf32> to vector<1x8x1xf32>
    %66 = vector.broadcast %65 : vector<1x8x1xf32> to vector<2x8x384xf32>
    %67 = arith.addf %63, %66 : vector<2x8x384xf32>
    %cst_23 = arith.constant 0.000000e+00 : f32
    %68 = vector.broadcast %cst_23 : f32 to vector<2x8x384xf32>
    %69 = arith.subf %68, %67 : vector<2x8x384xf32>
    %cst_24 = arith.constant 1.000000e-01 : f32
    %70 = vector.broadcast %cst_24 : f32 to vector<2x8x384xf32>
    %71 = arith.mulf %67, %70 : vector<2x8x384xf32>
    %72 = arith.minimumf %69, %71 : vector<2x8x384xf32>
    %c0_25 = arith.constant 0 : index
    %c0_26 = arith.constant 0 : index
    %c0_27 = arith.constant 0 : index
    %73 = vector.load %arg3[%c0_25, %c0_26, %c0_27] : memref<2x8x384xf32, #tpu.memory_space<vmem>>, vector<2x8x384xf32>
    tpu.vector_store %arg3[%c0_25, %c0_26, %c0_27], %72 {strides = array<i32>} : memref<2x8x384xf32, #tpu.memory_space<vmem>>, vector<2x8x384xf32>,
    return
  }
}

</mosaic_0001>

<llo_original>
// kernel: model_forward.1
$region0: #{model_forward.1}
  #allocation0 [shape = 'u32[]', space=smem, size = 0x4, offset = 0x4, fixed_abs, tag = 'smem constant byte address 0x4 - core index']
  #allocation1 [shape = 'u32[144,128]{1,0:T(1,128)}', space=vmem, size = 0x12000, scoped, tag = 'internal scratch']
  %s0 = inlined_call_operand.vmem [shape: f32[2,8,384], index: 0, kind: input, shape index: {}]
  %s1 = inlined_call_operand.vmem [shape: f32[9,8,1], index: 1, kind: input, shape index: {}]
  %s2 = inlined_call_operand.vmem [shape: f32[8,1], index: 2, kind: input, shape index: {}]
  %s3 = inlined_call_operand.vmem [shape: f32[2,8,384], index: 3, kind: output, shape index: {}]
  %s4 = sld [smem:[#allocation0]]
  $region22: #{model_forward.1} parent=0
    _
  %s6 = ssub.s32 1, %s4
  %s7 = scalar_select 0, %s6, %s4
  // Predicated region
  $region2: #{model_forward.1} parent=0 // pred_check
    _
  $region3: #{model_forward.1} parent=0 // pred_check_branch
    %9 = sbr.rel (0) target = $region5
  $region4: #{model_forward.1} parent=0 // pred_region
    _
  $region5: #{model_forward.1} parent=0 // pred_fallthru
    _
  // Predicated region
  $region6: #{model_forward.1} parent=0 // pred_check
    _
  $region7: #{model_forward.1} parent=0 // pred_check_branch
    %11 = sbr.rel (0) target = $region9
  $region8: #{model_forward.1} parent=0 // pred_region
    _
  $region9: #{model_forward.1} parent=0 // pred_fallthru
    _
  // Predicated region
  $region10: #{model_forward.1} parent=0 // pred_check
    _
  $region11: #{model_forward.1} parent=0 // pred_check_branch
    %13 = sbr.rel (0) target = $region13
  $region12: #{model_forward.1} parent=0 // pred_region
    _
  $region13: #{model_forward.1} parent=0 // pred_fallthru
    _
  %v14 = vld [vmem:[%s0] sm:$0xff]
  %v15 = vld [vmem:[%s0 + $0x8] sm:$0xff]
  %v16 = vld [vmem:[%s0 + $0x10] sm:$0xff]
  %v17 = vld [vmem:[%s0 + $0x18] sm:$0xff]
  %v18 = vld [vmem:[%s0 + $0x20] sm:$0xff]
  %v19 = vld [vmem:[%s0 + $0x28] sm:$0xff]
  %v20 = vld [vmem:[%s1] sm:$0xff]
  %22 = vset.pattern.permute.xlu0 0
  %23 = vperm.xlu0 %22, %v20
  %v24 = vpop.permute.xlu0 %23
  %v26 = vmul.f32 %v14, %v24
  %v27 = vmul.f32 %v15, %v24
  %v28 = vmul.f32 %v16, %v24
  %v29 = vmul.f32 %v17, %v24
  %v30 = vmul.f32 %v18, %v24
  %v31 = vmul.f32 %v19, %v24
  %v32 = vadd.f32 %v26, 0.0
  %v33 = vadd.f32 %v27, 0.0
  %v34 = vadd.f32 %v28, 0.0
  %v35 = vadd.f32 %v29, 0.0
  %v36 = vadd.f32 %v30, 0.0
  %v37 = vadd.f32 %v31, 0.0
  %38 = vrot.lane.b32.xlu0 %v14, 126
  %v39 = vpop.permute.xlu0 %38
  %40 = vrot.lane.b32.xlu0 %v17, 126
  %v41 = vpop.permute.xlu0 %40
  %42 = vrot.lane.b32.xlu0 %v15, 126
  %v43 = vpop.permute.xlu0 %42
  %44 = vrot.lane.b32.xlu0 %v18, 126
  %v45 = vpop.permute.xlu0 %44
  %46 = vrot.lane.b32.xlu0 %v16, 126
  %v47 = vpop.permute.xlu0 %46
  %48 = vrot.lane.b32.xlu0 %v19, 126
  %v49 = vpop.permute.xlu0 %48
  %v50 = vlaneseq
  %v51 = vand.u32 %v50, 127
  %vm52 = vcmp.lt.s32.totalorder %v51, 126
  %v53 = vsel %vm52, %v43, %v47
  %v54 = vsel %vm52, %v45, %v49
  %v55 = vsel %vm52, %v39, %v43
  %v56 = vsel %vm52, %v41, %v45
  %v57 = vsel %vm52, %v47, %v39
  %v58 = vsel %vm52, %v49, %v41
  %s59 = scalar_lea.vmem %s1, 8
  %v60 = vld [vmem:[%s59] sm:$0xff]
  %62 = vset.pattern.permute.xlu0 0
  %63 = vperm.xlu0 %62, %v60
  %v64 = vpop.permute.xlu0 %63
  %v66 = vmul.f32 %v55, %v64
  %v67 = vmul.f32 %v53, %v64
  %v68 = vmul.f32 %v57, %v64
  %v69 = vmul.f32 %v56, %v64
  %v70 = vmul.f32 %v54, %v64
  %v71 = vmul.f32 %v58, %v64
  %v72 = vadd.f32 %v32, %v66
  %v73 = vadd.f32 %v33, %v67
  %v74 = vadd.f32 %v34, %v68
  %v75 = vadd.f32 %v35, %v69
  %v76 = vadd.f32 %v36, %v70
  %v77 = vadd.f32 %v37, %v71
  %78 = vrot.lane.b32.xlu0 %v14, 124
  %v79 = vpop.permute.xlu0 %78
  %80 = vrot.lane.b32.xlu0 %v17, 124
  %v81 = vpop.permute.xlu0 %80
  %82 = vrot.lane.b32.xlu0 %v15, 124
  %v83 = vpop.permute.xlu0 %82
  %84 = vrot.lane.b32.xlu0 %v18, 124
  %v85 = vpop.permute.xlu0 %84
  %86 = vrot.lane.b32.xlu0 %v16, 124
  %v87 = vpop.permute.xlu0 %86
  %88 = vrot.lane.b32.xlu0 %v19, 124
  %v89 = vpop.permute.xlu0 %88
  %vm90 = vcmp.lt.s32.totalorder %v51, 124
  %v91 = vsel %vm90, %v83, %v87
  %v92 = vsel %vm90, %v85, %v89
  %v93 = vsel %vm90, %v79, %v83
  %v94 = vsel %vm90, %v81, %v85
  %v95 = vsel %vm90, %v87, %v79
  %v96 = vsel %vm90, %v89, %v81
  %s97 = scalar_lea.vmem %s1, 16
  %v98 = vld [vmem:[%s97] sm:$0xff]
  %100 = vset.pattern.permute.xlu0 0
  %101 = vperm.xlu0 %100, %v98
  %v102 = vpop.permute.xlu0 %101
  %v104 = vmul.f32 %v93, %v102
  %v105 = vmul.f32 %v91, %v102
  %v106 = vmul.f32 %v95, %v102
  %v107 = vmul.f32 %v94, %v102
  %v108 = vmul.f32 %v92, %v102
  %v109 = vmul.f32 %v96, %v102
  %v110 = vadd.f32 %v72, %v104
  %v111 = vadd.f32 %v73, %v105
  %v112 = vadd.f32 %v74, %v106
  %v113 = vadd.f32 %v75, %v107
  %v114 = vadd.f32 %v76, %v108
  %v115 = vadd.f32 %v77, %v109
  %116 = vrot.lane.b32.xlu0 %v14, 92
  %v117 = vpop.permute.xlu0 %116
  %118 = vrot.lane.b32.xlu0 %v17, 92
  %v119 = vpop.permute.xlu0 %118
  %120 = vrot.lane.b32.xlu0 %v15, 92
  %v121 = vpop.permute.xlu0 %120
  %122 = vrot.lane.b32.xlu0 %v18, 92
  %v123 = vpop.permute.xlu0 %122
  %124 = vrot.lane.b32.xlu0 %v16, 92
  %v125 = vpop.permute.xlu0 %124
  %126 = vrot.lane.b32.xlu0 %v19, 92
  %v127 = vpop.permute.xlu0 %126
  %vm128 = vcmp.lt.s32.totalorder %v51, 92
  %v129 = vsel %vm128, %v121, %v125
  %v130 = vsel %vm128, %v123, %v127
  %v131 = vsel %vm128, %v117, %v121
  %v132 = vsel %vm128, %v119, %v123
  %v133 = vsel %vm128, %v125, %v117
  %v134 = vsel %vm128, %v127, %v119
  %s135 = scalar_lea.vmem %s1, 24
  %v136 = vld [vmem:[%s135] sm:$0xff]
  %138 = vset.pattern.permute.xlu0 0
  %139 = vperm.xlu0 %138, %v136
  %v140 = vpop.permute.xlu0 %139
  %v142 = vmul.f32 %v131, %v140
  %v143 = vmul.f32 %v129, %v140
  %v144 = vmul.f32 %v133, %v140
  %v145 = vmul.f32 %v132, %v140
  %v146 = vmul.f32 %v130, %v140
  %v147 = vmul.f32 %v134, %v140
  %v148 = vadd.f32 %v110, %v142
  %v149 = vadd.f32 %v111, %v143
  %v150 = vadd.f32 %v112, %v144
  %v151 = vadd.f32 %v113, %v145
  %v152 = vadd.f32 %v114, %v146
  %v153 = vadd.f32 %v115, %v147
  %154 = vrot.lane.b32.xlu0 %v14, 90
  %v155 = vpop.permute.xlu0 %154
  %156 = vrot.lane.b32.xlu0 %v17, 90
  %v157 = vpop.permute.xlu0 %156
  %158 = vrot.lane.b32.xlu0 %v15, 90
  %v159 = vpop.permute.xlu0 %158
  %160 = vrot.lane.b32.xlu0 %v18, 90
  %v161 = vpop.permute.xlu0 %160
  %162 = vrot.lane.b32.xlu0 %v16, 90
  %v163 = vpop.permute.xlu0 %162
  %164 = vrot.lane.b32.xlu0 %v19, 90
  %v165 = vpop.permute.xlu0 %164
  %vm166 = vcmp.lt.s32.totalorder %v51, 90
  %v167 = vsel %vm166, %v159, %v163
  %v168 = vsel %vm166, %v161, %v165
  %v169 = vsel %vm166, %v155, %v159
  %v170 = vsel %vm166, %v157, %v161
  %v171 = vsel %vm166, %v163, %v155
  %v172 = vsel %vm166, %v165, %v157
  %s173 = scalar_lea.vmem %s1, 32
  %v174 = vld [vmem:[%s173] sm:$0xff]
  %176 = vset.pattern.permute.xlu0 0
  %177 = vperm.xlu0 %176, %v174
  %v178 = vpop.permute.xlu0 %177
  %v180 = vmul.f32 %v169, %v178
  %v181 = vmul.f32 %v167, %v178
  %v182 = vmul.f32 %v171, %v178
  %v183 = vmul.f32 %v170, %v178
  %v184 = vmul.f32 %v168, %v178
  %v185 = vmul.f32 %v172, %v178
  %v186 = vadd.f32 %v148, %v180
  %v187 = vadd.f32 %v149, %v181
  %v188 = vadd.f32 %v150, %v182
  %v189 = vadd.f32 %v151, %v183
  %v190 = vadd.f32 %v152, %v184
  %v191 = vadd.f32 %v153, %v185
  %192 = vrot.lane.b32.xlu0 %v14, 88
  %v193 = vpop.permute.xlu0 %192
  %194 = vrot.lane.b32.xlu0 %v17, 88
  %v195 = vpop.permute.xlu0 %194
  %196 = vrot.lane.b32.xlu0 %v15, 88
  %v197 = vpop.permute.xlu0 %196
  %198 = vrot.lane.b32.xlu0 %v18, 88
  %v199 = vpop.permute.xlu0 %198
  %200 = vrot.lane.b32.xlu0 %v16, 88
  %v201 = vpop.permute.xlu0 %200
  %202 = vrot.lane.b32.xlu0 %v19, 88
  %v203 = vpop.permute.xlu0 %202
  %vm204 = vcmp.lt.s32.totalorder %v51, 88
  %v205 = vsel %vm204, %v197, %v201
  %v206 = vsel %vm204, %v199, %v203
  %v207 = vsel %vm204, %v193, %v197
  %v208 = vsel %vm204, %v195, %v199
  %v209 = vsel %vm204, %v201, %v193
  %v210 = vsel %vm204, %v203, %v195
  %s211 = scalar_lea.vmem %s1, 40
  %v212 = vld [vmem:[%s211] sm:$0xff]
  %214 = vset.pattern.permute.xlu0 0
  %215 = vperm.xlu0 %214, %v212
  %v216 = vpop.permute.xlu0 %215
  %v218 = vmul.f32 %v207, %v216
  %v219 = vmul.f32 %v205, %v216
  %v220 = vmul.f32 %v209, %v216
  %v221 = vmul.f32 %v208, %v216
  %v222 = vmul.f32 %v206, %v216
  %v223 = vmul.f32 %v210, %v216
  %v224 = vadd.f32 %v186, %v218
  %v225 = vadd.f32 %v187, %v219
  %v226 = vadd.f32 %v188, %v220
  %v227 = vadd.f32 %v189, %v221
  %v228 = vadd.f32 %v190, %v222
  %v229 = vadd.f32 %v191, %v223
  %230 = vrot.lane.b32.xlu0 %v14, 56
  %v231 = vpop.permute.xlu0 %230
  %232 = vrot.lane.b32.xlu0 %v17, 56
  %v233 = vpop.permute.xlu0 %232
  %234 = vrot.lane.b32.xlu0 %v15, 56
  %v235 = vpop.permute.xlu0 %234
  %236 = vrot.lane.b32.xlu0 %v18, 56
  %v237 = vpop.permute.xlu0 %236
  %238 = vrot.lane.b32.xlu0 %v16, 56
  %v239 = vpop.permute.xlu0 %238
  %240 = vrot.lane.b32.xlu0 %v19, 56
  %v241 = vpop.permute.xlu0 %240
  %vm242 = vcmp.lt.s32.totalorder %v51, 56
  %v243 = vsel %vm242, %v235, %v239
  %v244 = vsel %vm242, %v237, %v241
  %v245 = vsel %vm242, %v231, %v235
  %v246 = vsel %vm242, %v233, %v237
  %v247 = vsel %vm242, %v239, %v231
  %v248 = vsel %vm242, %v241, %v233
  %s249 = scalar_lea.vmem %s1, 48
  %v250 = vld [vmem:[%s249] sm:$0xff]
  %252 = vset.pattern.permute.xlu0 0
  %253 = vperm.xlu0 %252, %v250
  %v254 = vpop.permute.xlu0 %253
  %v256 = vmul.f32 %v245, %v254
  %v257 = vmul.f32 %v243, %v254
  %v258 = vmul.f32 %v247, %v254
  %v259 = vmul.f32 %v246, %v254
  %v260 = vmul.f32 %v244, %v254
  %v261 = vmul.f32 %v248, %v254
  %v262 = vadd.f32 %v224, %v256
  %v263 = vadd.f32 %v225, %v257
  %v264 = vadd.f32 %v226, %v258
  %v265 = vadd.f32 %v227, %v259
  %v266 = vadd.f32 %v228, %v260
  %v267 = vadd.f32 %v229, %v261
  %268 = vrot.lane.b32.xlu0 %v14, 54
  %v269 = vpop.permute.xlu0 %268
  %270 = vrot.lane.b32.xlu0 %v17, 54
  %v271 = vpop.permute.xlu0 %270
  %272 = vrot.lane.b32.xlu0 %v15, 54
  %v273 = vpop.permute.xlu0 %272
  %274 = vrot.lane.b32.xlu0 %v18, 54
  %v275 = vpop.permute.xlu0 %274
  %276 = vrot.lane.b32.xlu0 %v16, 54
  %v277 = vpop.permute.xlu0 %276
  %278 = vrot.lane.b32.xlu0 %v19, 54
  %v279 = vpop.permute.xlu0 %278
  %vm280 = vcmp.lt.s32.totalorder %v51, 54
  %v281 = vsel %vm280, %v273, %v277
  %v282 = vsel %vm280, %v275, %v279
  %v283 = vsel %vm280, %v269, %v273
  %v284 = vsel %vm280, %v271, %v275
  %v285 = vsel %vm280, %v277, %v269
  %v286 = vsel %vm280, %v279, %v271
  %s287 = scalar_lea.vmem %s1, 56
  %v288 = vld [vmem:[%s287] sm:$0xff]
  %290 = vset.pattern.permute.xlu0 0
  %291 = vperm.xlu0 %290, %v288
  %v292 = vpop.permute.xlu0 %291
  %v294 = vmul.f32 %v283, %v292
  %v295 = vmul.f32 %v281, %v292
  %v296 = vmul.f32 %v285, %v292
  %v297 = vmul.f32 %v284, %v292
  %v298 = vmul.f32 %v282, %v292
  %v299 = vmul.f32 %v286, %v292
  %v300 = vadd.f32 %v262, %v294
  %v301 = vadd.f32 %v263, %v295
  %v302 = vadd.f32 %v264, %v296
  %v303 = vadd.f32 %v265, %v297
  %v304 = vadd.f32 %v266, %v298
  %v305 = vadd.f32 %v267, %v299
  %306 = vrot.lane.b32.xlu0 %v14, 52
  %v307 = vpop.permute.xlu0 %306
  %308 = vrot.lane.b32.xlu0 %v17, 52
  %v309 = vpop.permute.xlu0 %308
  %310 = vrot.lane.b32.xlu0 %v15, 52
  %v311 = vpop.permute.xlu0 %310
  %312 = vrot.lane.b32.xlu0 %v18, 52
  %v313 = vpop.permute.xlu0 %312
  %314 = vrot.lane.b32.xlu0 %v16, 52
  %v315 = vpop.permute.xlu0 %314
  %316 = vrot.lane.b32.xlu0 %v19, 52
  %v317 = vpop.permute.xlu0 %316
  %vm318 = vcmp.lt.s32.totalorder %v51, 52
  %v319 = vsel %vm318, %v311, %v315
  %v320 = vsel %vm318, %v313, %v317
  %v321 = vsel %vm318, %v307, %v311
  %v322 = vsel %vm318, %v309, %v313
  %v323 = vsel %vm318, %v315, %v307
  %v324 = vsel %vm318, %v317, %v309
  %s325 = scalar_lea.vmem %s1, 64
  %v326 = vld [vmem:[%s325] sm:$0xff]
  %328 = vset.pattern.permute.xlu0 0
  %329 = vperm.xlu0 %328, %v326
  %v330 = vpop.permute.xlu0 %329
  %v332 = vmul.f32 %v321, %v330
  %v333 = vmul.f32 %v319, %v330
  %v334 = vmul.f32 %v323, %v330
  %v335 = vmul.f32 %v322, %v330
  %v336 = vmul.f32 %v320, %v330
  %v337 = vmul.f32 %v324, %v330
  %v338 = vadd.f32 %v300, %v332
  %v339 = vadd.f32 %v301, %v333
  %v340 = vadd.f32 %v302, %v334
  %v341 = vadd.f32 %v303, %v335
  %v342 = vadd.f32 %v304, %v336
  %v343 = vadd.f32 %v305, %v337
  %v344 = vld [vmem:[%s2] sm:$0xff]
  %346 = vset.pattern.permute.xlu0 0
  %347 = vperm.xlu0 %346, %v344
  %v348 = vpop.permute.xlu0 %347
  %v350 = vadd.f32 %v338, %v348
  %v351 = vadd.f32 %v339, %v348
  %v352 = vadd.f32 %v340, %v348
  %v353 = vadd.f32 %v341, %v348
  %v354 = vadd.f32 %v342, %v348
  %v355 = vadd.f32 %v343, %v348
  %v356 = vsub.f32 0.0, %v350
  %v357 = vsub.f32 0.0, %v351
  %v358 = vsub.f32 0.0, %v352
  %v359 = vsub.f32 0.0, %v353
  %v360 = vsub.f32 0.0, %v354
  %v361 = vsub.f32 0.0, %v355
  %v362 = vmul.f32 %v350, 0.1
  %v363 = vmul.f32 %v351, 0.1
  %v364 = vmul.f32 %v352, 0.1
  %v365 = vmul.f32 %v353, 0.1
  %v366 = vmul.f32 %v354, 0.1
  %v367 = vmul.f32 %v355, 0.1
  %v368 = vmin.f32 %v356, %v362
  %v369 = vmin.f32 %v357, %v363
  %v370 = vmin.f32 %v358, %v364
  %v371 = vmin.f32 %v359, %v365
  %v372 = vmin.f32 %v360, %v366
  %v373 = vmin.f32 %v361, %v367
  %374 = vst [vmem:[%s3] sm:$0xff] %v368
  %375 = vst [vmem:[%s3 + $0x8] sm:$0xff] %v369
  %376 = vst [vmem:[%s3 + $0x10] sm:$0xff] %v370
  %377 = vst [vmem:[%s3 + $0x18] sm:$0xff] %v371
  %378 = vst [vmem:[%s3 + $0x20] sm:$0xff] %v372
  %379 = vst [vmem:[%s3 + $0x28] sm:$0xff] %v373
  // Predicated region
  $region14: #{model_forward.1} parent=0 // pred_check
    _
  $region15: #{model_forward.1} parent=0 // pred_check_branch
    %381 = sbr.rel (0) target = $region17
  $region16: #{model_forward.1} parent=0 // pred_region
    _
  $region17: #{model_forward.1} parent=0 // pred_fallthru
    _
  // Predicated region
  $region18: #{model_forward.1} parent=0 // pred_check
    _
  $region19: #{model_forward.1} parent=0 // pred_check_branch
    %383 = sbr.rel (0) target = $region21
  $region20: #{model_forward.1} parent=0 // pred_region
    _
  $region21: #{model_forward.1} parent=0 // pred_fallthru
    _

</llo_original>
